<compile_context>
chip_gen: v7x
topology: tpu7x:2x2x1
jax: 0.10.0
libtpu: 0.0.40
codegen_flags: <defaults>
</compile_context>

<pallas_src>
import jax
import jax.numpy as jnp
from jax.experimental import pallas as pl
from jax.experimental.pallas import tpu as pltpu


def _round_up(x, m):
    return ((x + m - 1) // m) * m


def _vmem_budget_bytes():
    """~75% of physical VMEM: ~96 MiB on v5e/v6e (128 MiB), ~48 MiB on v7x (64 MiB/TC)."""
    cap = 128 * 1024 * 1024
    try:
        cap = int(pltpu.get_tpu_info().vmem_capacity_bytes)
    except Exception:
        pass
    return (cap * 3) // 4


# ---------------------------------------------------------------------------
# Kernels
# ---------------------------------------------------------------------------
def _ffn_resident_kernel(x_ref, w1_ref, b1_ref, w2_ref, b2_ref, o_ref):
    """Full-K FFN; W1/W2/b1/b2 stay VMEM-resident across all row tiles."""
    h = jnp.dot(x_ref[...], w1_ref[...], preferred_element_type=jnp.float32)
    h = jnp.maximum(h + b1_ref[...].astype(jnp.float32), 0.0)
    y = jnp.dot(h.astype(w2_ref.dtype), w2_ref[...],
                preferred_element_type=jnp.float32)
    o_ref[...] = (y + b2_ref[...].astype(jnp.float32)).astype(o_ref.dtype)


def _ffn_kstream_kernel(x_ref, w1_ref, b1_ref, w2_ref, b2_ref, o_ref, acc_ref):
    """d_ff-streamed FFN; k (last grid axis) walks W1 columns / W2 rows."""
    k = pl.program_id(1)
    nk = pl.num_programs(1)

    h = jnp.dot(x_ref[...], w1_ref[...], preferred_element_type=jnp.float32)
    h = jnp.maximum(h + b1_ref[...].astype(jnp.float32), 0.0)
    contrib = jnp.dot(h.astype(w2_ref.dtype), w2_ref[...],
                      preferred_element_type=jnp.float32)

    @pl.when(k == 0)
    def _():
        # Fold the b2 add into the accumulator init.
        acc_ref[...] = jnp.broadcast_to(
            b2_ref[...].astype(jnp.float32), acc_ref.shape)

    @pl.when(k < nk - 1)
    def _():
        acc_ref[...] += contrib

    @pl.when(k == nk - 1)
    def _():
        # Fuse the final accumulate with the store (skip one f32 acc round-trip).
        o_ref[...] = (acc_ref[...] + contrib).astype(o_ref.dtype)


# ---------------------------------------------------------------------------
# Weight preparation (hoisted out of the per-call hot path)
# ---------------------------------------------------------------------------
def prepare_ffn_params(w1, b1, w2, b2, *, compute_dtype=jnp.bfloat16):
    """Pad (lane-dense multiples of 128) + cast the FFN weights once.

    w1: (d_model, d_ff)  b1: (d_ff,)  w2: (d_ff, d_model)  b2: (d_model,)
    Returns (w1p, b1p, w2p, b2p); zero padding is exact for this op.
    """
    d_model, d_ff = w1.shape
    assert w2.shape == (d_ff, d_model)
    cd = jnp.dtype(compute_dtype)
    dm_p = _round_up(d_model, 128)
    dff_p = _round_up(d_ff, 128)

    def pad2d(a, r, c):
        a = a.astype(cd)
        if a.shape == (r, c):
            return a
        return jnp.zeros((r, c), cd).at[:a.shape[0], :a.shape[1]].set(a)

    def pad_bias(b, n):
        b = b.astype(jnp.float32)
        if b.shape[0] == n:
            return b.reshape(1, n)
        return jnp.zeros((1, n), jnp.float32).at[0, :b.shape[0]].set(b)

    return (pad2d(w1, dm_p, dff_p), pad_bias(b1, dff_p),
            pad2d(w2, dff_p, dm_p), pad_bias(b2, dm_p))


# ---------------------------------------------------------------------------
# Core dispatch
# ---------------------------------------------------------------------------
def apply_ffn(x, w1p, b1p, w2p, b2p, *, row_tile=512, k_tile=1024,
              out_dtype=None, schedule="auto"):
    """x: (B, L, d_model); w*/b* already padded by prepare_ffn_params."""
    B, L, d_model = x.shape
    rows = B * L
    dm_p, dff_p = w1p.shape
    assert dm_p == _round_up(d_model, 128)
    cd = w1p.dtype
    cd_b = jnp.dtype(cd).itemsize
    out_dtype = x.dtype if out_dtype is None else jnp.dtype(out_dtype)
    out_b = jnp.dtype(out_dtype).itemsize
    budget = _vmem_budget_bytes()

    # Row tile: multiple of 8 sublanes; shrink for tiny problems.
    row_tile = max(8, min(_round_up(row_tile, 8), _round_up(rows, 8)))

    def resident_bytes(rt):
        return (2 * rt * dm_p * cd_b              # x tile (double-buffered)
                + 2 * rt * dm_p * out_b           # out tile (double-buffered)
                + 2 * 2 * dm_p * dff_p * cd_b     # W1 + W2 (counted x2, conservative)
                + 2 * 4 * (dff_p + 2 * dm_p)      # biases
                + rt * dff_p * 4)                 # f32 hidden intermediate

    def stream_bytes(rt, kt):
        return (2 * rt * dm_p * cd_b
                + 2 * rt * dm_p * out_b
                + 2 * 2 * dm_p * kt * cd_b        # W1/W2 chunks (double-buffered)
                + 2 * 4 * (kt + 2 * dm_p)
                + rt * dm_p * 4                   # f32 accumulator scratch
                + rt * kt * 4)                    # f32 hidden chunk

    # ---- pick schedule -----------------------------------------------------
    use_resident = (schedule == "resident")
    if schedule == "auto":
        rt = row_tile
        while True:
            if resident_bytes(rt) <= budget:
                use_resident, row_tile = True, rt
                break
            nrt = _round_up(max(8, rt // 2), 8)
            if nrt >= rt or nrt < 128:
                break
            rt = nrt

    if not use_resident:
        # K-streamed fallback: k_tile must divide dff_p (no wasted zero chunk),
        # and tiles must fit the per-generation VMEM budget.
        k_tile = max(128, min((k_tile // 128) * 128, dff_p))
        while dff_p % k_tile:
            k_tile -= 128
        while stream_bytes(row_tile, k_tile) > budget and k_tile > 128:
            kt = max(128, ((k_tile // 2) // 128) * 128)
            while dff_p % kt:
                kt -= 128
            if kt >= k_tile:
                break
            k_tile = kt
        while stream_bytes(row_tile, k_tile) > budget and row_tile > 8:
            row_tile = _round_up(max(8, row_tile // 2), 8)

    rows_p = _round_up(rows, row_tile)

    # x: skip the pad/copy entirely when already tile-aligned (cast only).
    x2d = x.reshape(rows, d_model)
    if rows_p == rows and dm_p == d_model:
        x2d = x2d.astype(cd)
    else:
        x2d = jnp.zeros((rows_p, dm_p), cd).at[:rows, :d_model].set(
            x2d.astype(cd))

    if use_resident:
        out2d = pl.pallas_call(
            _ffn_resident_kernel,
            out_shape=jax.ShapeDtypeStruct((rows_p, dm_p), out_dtype),
            grid_spec=pltpu.PrefetchScalarGridSpec(
                num_scalar_prefetch=0,
                grid=(rows_p // row_tile,),
                in_specs=[
                    pl.BlockSpec((row_tile, dm_p), lambda i: (i, 0)),  # x rows
                    pl.BlockSpec((dm_p, dff_p), lambda i: (0, 0)),     # W1 (resident)
                    pl.BlockSpec((1, dff_p), lambda i: (0, 0)),        # b1
                    pl.BlockSpec((dff_p, dm_p), lambda i: (0, 0)),     # W2 (resident)
                    pl.BlockSpec((1, dm_p), lambda i: (0, 0)),         # b2
                ],
                out_specs=pl.BlockSpec((row_tile, dm_p), lambda i: (i, 0)),
            ),
            compiler_params=pltpu.CompilerParams(
                dimension_semantics=("parallel",),
                vmem_limit_bytes=budget,
            ),
        )(x2d, w1p, b1p, w2p, b2p)
    else:
        out2d = pl.pallas_call(
            _ffn_kstream_kernel,
            out_shape=jax.ShapeDtypeStruct((rows_p, dm_p), out_dtype),
            grid_spec=pltpu.PrefetchScalarGridSpec(
                num_scalar_prefetch=0,
                grid=(rows_p // row_tile, dff_p // k_tile),
                in_specs=[
                    pl.BlockSpec((row_tile, dm_p), lambda i, k: (i, 0)),  # x rows
                    pl.BlockSpec((dm_p, k_tile), lambda i, k: (0, k)),    # W1 chunk
                    pl.BlockSpec((1, k_tile), lambda i, k: (0, k)),       # b1 chunk
                    pl.BlockSpec((k_tile, dm_p), lambda i, k: (k, 0)),    # W2 chunk
                    pl.BlockSpec((1, dm_p), lambda i, k: (0, 0)),         # b2
                ],
                out_specs=pl.BlockSpec((row_tile, dm_p), lambda i, k: (i, 0)),
                scratch_shapes=[pltpu.VMEM((row_tile, dm_p), jnp.float32)],
            ),
            compiler_params=pltpu.CompilerParams(
                dimension_semantics=("parallel", "arbitrary"),
                vmem_limit_bytes=budget,
            ),
        )(x2d, w1p, b1p, w2p, b2p)

    return out2d[:rows, :d_model].reshape(B, L, d_model)


# ---------------------------------------------------------------------------
# Convenience wrappers
# ---------------------------------------------------------------------------
def positionwise_ffn(x, w1, b1, w2, b2, *, row_tile=512, k_tile=1024,
                     compute_dtype=jnp.bfloat16, out_dtype=None,
                     schedule="auto"):
    """One-shot convenience (pads/casts weights per call).  For repeated calls
    prefer make_positionwise_ffn so weight prep is hoisted out of the hot path."""
    w1p, b1p, w2p, b2p = prepare_ffn_params(w1, b1, w2, b2,
                                            compute_dtype=compute_dtype)
    return apply_ffn(x, w1p, b1p, w2p, b2p, row_tile=row_tile, k_tile=k_tile,
                     out_dtype=out_dtype, schedule=schedule)


def make_positionwise_ffn(w1, b1, w2, b2, *, row_tile=512, k_tile=1024,
                          compute_dtype=jnp.bfloat16, out_dtype=None,
                          schedule="auto"):
    """Prepare (pad + cast) weights once; return a jitted x -> y callable."""
    params = tuple(jax.block_until_ready(p) for p in prepare_ffn_params(
        w1, b1, w2, b2, compute_dtype=compute_dtype))

    @jax.jit
    def fn(x):
        return apply_ffn(x, *params, row_tile=row_tile, k_tile=k_tile,
                         out_dtype=out_dtype, schedule=schedule)

    return fn


def _ref_ffn(x, w1, b1, w2, b2):
    return jnp.maximum(x @ w1 + b1, 0.0) @ w2 + b2


if __name__ == "__main__":
    # Small shapes consistent with the module's forward: (B, max_length, d_model).
    B, L, d_model, d_ff = 2, 8, 32, 64

    key = jax.random.PRNGKey(0)
    kx, kw1, kb1, kw2, kb2 = jax.random.split(key, 5)

    x = jax.random.normal(kx, (B, L, d_model), dtype=jnp.float32)
    # PyTorch Linear weights, stored pre-transposed: (in, out).
    w1 = jax.random.normal(kw1, (d_model, d_ff), dtype=jnp.float32) * 0.05
    b1 = jax.random.normal(kb1, (d_ff,), dtype=jnp.float32) * 0.05
    w2 = jax.random.normal(kw2, (d_ff, d_model), dtype=jnp.float32) * 0.05
    b2 = jax.random.normal(kb2, (d_model,), dtype=jnp.float32) * 0.05

    ref = _ref_ffn(x, w1, b1, w2, b2)

    # 1) f32 compute path (resident-weight schedule; exact-ish check).
    out_f32 = positionwise_ffn(x, w1, b1, w2, b2, compute_dtype=jnp.float32)
    out_f32 = jax.block_until_ready(out_f32)
    assert out_f32.shape == (B, L, d_model)
    assert jnp.allclose(out_f32, ref, atol=1e-4, rtol=1e-4)

    # 2) Default bf16 MXU path via the hoisted-weights (hot-path) closure.
    ffn_bf16 = make_positionwise_ffn(w1, b1, w2, b2)
    out_bf16 = jax.block_until_ready(ffn_bf16(x))
    assert out_bf16.shape == (B, L, d_model)
    assert jnp.allclose(out_bf16, ref, atol=2e-2, rtol=2e-2)

    # 3) Larger case: multi-row-tile grid.  Check both the resident schedule and
    #    a forced K-streamed schedule (exercises the accumulator + fused final
    #    store path that is used when weights don't fit VMEM).
    B2, L2, dm2, dff2 = 4, 128, 128, 256
    k2 = jax.random.PRNGKey(1)
    k2x, k2w1, k2b1, k2w2, k2b2 = jax.random.split(k2, 5)
    x2 = jax.random.normal(k2x, (B2, L2, dm2), dtype=jnp.float32)
    w1_2 = jax.random.normal(k2w1, (dm2, dff2), dtype=jnp.float32) * 0.03
    b1_2 = jax.random.normal(k2b1, (dff2,), dtype=jnp.float32) * 0.03
    w2_2 = jax.random.normal(k2w2, (dff2, dm2), dtype=jnp.float32) * 0.03
    b2_2 = jax.random.normal(k2b2, (dm2,), dtype=jnp.float32) * 0.03
    ref2 = _ref_ffn(x2, w1_2, b1_2, w2_2, b2_2)

    out2_res = positionwise_ffn(x2, w1_2, b1_2, w2_2, b2_2,
                                row_tile=256, compute_dtype=jnp.float32,
                                schedule="resident")
    out2_res = jax.block_until_ready(out2_res)
    assert out2_res.shape == (B2, L2, dm2)
    assert jnp.allclose(out2_res, ref2, atol=1e-3, rtol=1e-3)

    out2_ks = positionwise_ffn(x2, w1_2, b1_2, w2_2, b2_2,
                               row_tile=256, k_tile=128,
                               compute_dtype=jnp.float32,
                               schedule="kstream")
    out2_ks = jax.block_until_ready(out2_ks)
    assert out2_ks.shape == (B2, L2, dm2)
    assert jnp.allclose(out2_ks, ref2, atol=1e-3, rtol=1e-3)

    print("KERNEL_OK")
</pallas_src>

<mosaic_0001>
module attributes {stable_mosaic.version = 11 : i64} {
  func.func @_ffn_resident_kernel(%arg0: i32, %arg1: memref<16x128xf32, #tpu.memory_space<vmem>>, %arg2: memref<128x128xf32, #tpu.memory_space<vmem>>, %arg3: memref<1x128xf32, #tpu.memory_space<vmem>>, %arg4: memref<128x128xf32, #tpu.memory_space<vmem>>, %arg5: memref<1x128xf32, #tpu.memory_space<vmem>>, %arg6: memref<16x128xf32, #tpu.memory_space<vmem>>) attributes {dimension_semantics = [#tpu.dimension_semantics<parallel>], iteration_bounds = array<i64: 1>, scalar_prefetch = 0 : i64, scratch_operands = 0 : i64, tpu.core_type = #tpu.core_type<tc>, window_params = [{transform_indices = @transform_0, window_bounds = array<i64: 16, 128>}, {pipeline_mode = #tpu.pipeline_mode<synchronous>, transform_indices = @transform_1, window_bounds = array<i64: 128, 128>}, {pipeline_mode = #tpu.pipeline_mode<synchronous>, transform_indices = @transform_2, window_bounds = array<i64: 1, 128>}, {pipeline_mode = #tpu.pipeline_mode<synchronous>, transform_indices = @transform_3, window_bounds = array<i64: 128, 128>}, {pipeline_mode = #tpu.pipeline_mode<synchronous>, transform_indices = @transform_4, window_bounds = array<i64: 1, 128>}, {transform_indices = @transform_5, window_bounds = array<i64: 16, 128>}]} {
    %c0 = arith.constant 0 : index
    %c0_0 = arith.constant 0 : index
    %0 = vector.load %arg1[%c0, %c0_0] : memref<16x128xf32, #tpu.memory_space<vmem>>, vector<16x128xf32>
    %c0_1 = arith.constant 0 : index
    %c0_2 = arith.constant 0 : index
    %1 = vector.load %arg2[%c0_1, %c0_2] : memref<128x128xf32, #tpu.memory_space<vmem>>, vector<128x128xf32>
    %cst = arith.constant dense<0.000000e+00> : vector<16x128xf32>
    %2 = tpu.matmul %0, %1, %cst {dimension_numbers = #tpu.dot_dimension_numbers<[1], [0], [0], [1], [0, 0, 1, 1], [], []>} : vector<16x128xf32>, vector<128x128xf32>, vector<16x128xf32> -> vector<16x128xf32>
    %c0_3 = arith.constant 0 : index
    %c0_4 = arith.constant 0 : index
    %3 = vector.load %arg3[%c0_3, %c0_4] : memref<1x128xf32, #tpu.memory_space<vmem>>, vector<1x128xf32>
    %4 = vector.broadcast %3 : vector<1x128xf32> to vector<16x128xf32>
    %5 = arith.addf %2, %4 : vector<16x128xf32>
    %cst_5 = arith.constant 0.000000e+00 : f32
    %6 = vector.broadcast %cst_5 : f32 to vector<16x128xf32>
    %7 = arith.maximumf %5, %6 : vector<16x128xf32>
    %c0_6 = arith.constant 0 : index
    %c0_7 = arith.constant 0 : index
    %8 = vector.load %arg4[%c0_6, %c0_7] : memref<128x128xf32, #tpu.memory_space<vmem>>, vector<128x128xf32>
    %cst_8 = arith.constant dense<0.000000e+00> : vector<16x128xf32>
    %9 = tpu.matmul %7, %8, %cst_8 {dimension_numbers = #tpu.dot_dimension_numbers<[1], [0], [0], [1], [0, 0, 1, 1], [], []>} : vector<16x128xf32>, vector<128x128xf32>, vector<16x128xf32> -> vector<16x128xf32>
    %c0_9 = arith.constant 0 : index
    %c0_10 = arith.constant 0 : index
    %10 = vector.load %arg5[%c0_9, %c0_10] : memref<1x128xf32, #tpu.memory_space<vmem>>, vector<1x128xf32>
    %11 = vector.broadcast %10 : vector<1x128xf32> to vector<16x128xf32>
    %12 = arith.addf %9, %11 : vector<16x128xf32>
    %c0_11 = arith.constant 0 : index
    %c0_12 = arith.constant 0 : index
    %13 = vector.load %arg6[%c0_11, %c0_12] : memref<16x128xf32, #tpu.memory_space<vmem>>, vector<16x128xf32>
    tpu.vector_store %arg6[%c0_11, %c0_12], %12 {strides = array<i32>} : memref<16x128xf32, #tpu.memory_space<vmem>>, vector<16x128xf32>,
    return
  }
  func.func @transform_0(%arg0: i32) -> (i32, i32) {
    %c0_i32 = arith.constant 0 : i32
    %c0_i32_0 = arith.constant 0 : i32
    return %arg0, %c0_i32 : i32, i32
  }
  func.func @transform_1(%arg0: i32) -> (i32, i32) {
    %c0_i32 = arith.constant 0 : i32
    %c0_i32_0 = arith.constant 0 : i32
    %c0_i32_1 = arith.constant 0 : i32
    return %c0_i32, %c0_i32_0 : i32, i32
  }
  func.func @transform_2(%arg0: i32) -> (i32, i32) {
    %c0_i32 = arith.constant 0 : i32
    %c0_i32_0 = arith.constant 0 : i32
    %c0_i32_1 = arith.constant 0 : i32
    return %c0_i32, %c0_i32_0 : i32, i32
  }
  func.func @transform_3(%arg0: i32) -> (i32, i32) {
    %c0_i32 = arith.constant 0 : i32
    %c0_i32_0 = arith.constant 0 : i32
    %c0_i32_1 = arith.constant 0 : i32
    return %c0_i32, %c0_i32_0 : i32, i32
  }
  func.func @transform_4(%arg0: i32) -> (i32, i32) {
    %c0_i32 = arith.constant 0 : i32
    %c0_i32_0 = arith.constant 0 : i32
    %c0_i32_1 = arith.constant 0 : i32
    return %c0_i32, %c0_i32_0 : i32, i32
  }
  func.func @transform_5(%arg0: i32) -> (i32, i32) {
    %c0_i32 = arith.constant 0 : i32
    %c0_i32_0 = arith.constant 0 : i32
    return %arg0, %c0_i32 : i32, i32
  }
}

</mosaic_0001>

<llo_original>
// kernel: tpu_custom_call.1
$region0: #{tpu_custom_call.1}
  #allocation0 [shape = 'u32[]', space=smem, size = 0x4, offset = 0x4, fixed_abs, tag = 'smem constant byte address 0x4 - core index']
  #allocation1 [shape = 'u32[144,128]{1,0:T(1,128)}', space=vmem, size = 0x12000, scoped, tag = 'internal scratch']
  %s0 = inlined_call_operand.hbm [shape: f32[16,128], index: 0, kind: input, shape index: {}]
  %s1 = inlined_call_operand.hbm [shape: f32[128,128], index: 1, kind: input, shape index: {}]
  %s2 = inlined_call_operand.hbm [shape: f32[1,128], index: 2, kind: input, shape index: {}]
  %s3 = inlined_call_operand.hbm [shape: f32[128,128], index: 3, kind: input, shape index: {}]
  %s4 = inlined_call_operand.hbm [shape: f32[1,128], index: 4, kind: input, shape index: {}]
  %s5 = inlined_call_operand.hbm [shape: f32[16,128], index: 5, kind: output, shape index: {}]
  %s6 = sld [smem:[#allocation0]]
  $region50: #{tpu_custom_call.1} parent=0
    _
  %s8 = ssub.s32 1, %s6
  %s9 = scalar_select 0, %s8, %s6
  $region1: #{tpu_custom_call.1} parent=0
    #allocation2 [shape = 'u8[8192]{0}', space=vmem, size = 0x2000, scoped, tag = 'input window, operand 0, single buffered']
    #allocation3 [shape = 's32[1]{0}', space=sflag, size = 0x4, scoped, tag = 'scoped memory for tpu_custom_call.1']
    #allocation4 [shape = 's32[1]{0}', space=sflag, size = 0x4, scoped, tag = 'scoped memory for tpu_custom_call.1']
    #allocation5 [shape = 'u8[65536]{0}', space=vmem, size = 0x10000, scoped, tag = 'input window, operand 1, single buffered']
    #allocation6 [shape = 's32[1]{0}', space=sflag, size = 0x4, scoped, tag = 'scoped memory for tpu_custom_call.1']
    #allocation7 [shape = 'u8[512]{0}', space=vmem, size = 0x400, scoped, tag = 'input window, operand 2, single buffered']
    #allocation8 [shape = 'u8[65536]{0}', space=vmem, size = 0x10000, scoped, tag = 'input window, operand 3, single buffered']
    #allocation9 [shape = 's32[1]{0}', space=sflag, size = 0x4, scoped, tag = 'scoped memory for tpu_custom_call.1']
    #allocation10 [shape = 'u8[512]{0}', space=vmem, size = 0x400, scoped, tag = 'input window, operand 4, single buffered']
    #allocation11 [shape = 'u8[8192]{0}', space=vmem, size = 0x2000, scoped, tag = 'output window, operand 0, single buffered']
    %10 = vsyncpa [#allocation3], 0
    %11 = vsyncpa [#allocation6], 0
    %12 = vsyncpa [#allocation9], 0
    %13 = vsyncpa [#allocation4], 0
    // Predicated region
    $region2: #{tpu_custom_call.1} parent=1 // pred_check
      _
    $region3: #{tpu_custom_call.1} parent=1 // pred_check_branch
      %15 = sbr.rel (0) target = $region5
    $region4: #{tpu_custom_call.1} parent=1 // pred_region
      %s17 = ssub.s32 256, 256
      %18 = vsyncadd [#allocation3], %s17
      %s19 = sshll.u32 [#allocation2], 4
      %s20 = int_to_ptr.vmem [resolvable:$true] %s19
      %25 = dma.hbm_to_vmem [thread:$0]  %s0, 256, %s20, [#allocation3], 128, 128, 8
    $region5: #{tpu_custom_call.1} parent=1 // pred_fallthru
      _
    // Predicated region
    $region6: #{tpu_custom_call.1} parent=1 // pred_check
      _
    $region7: #{tpu_custom_call.1} parent=1 // pred_check_branch
      %27 = sbr.rel (0) target = $region9
    $region8: #{tpu_custom_call.1} parent=1 // pred_region
      %s29 = ssub.s32 2048, 2048
      %30 = vsyncadd [#allocation6], %s29
      %s31 = sshll.u32 [#allocation5], 4
      %s32 = int_to_ptr.vmem [resolvable:$true] %s31
      %37 = dma.hbm_to_vmem [thread:$0]  %s1, 2048, %s32, [#allocation6], 128, 128, 8
    $region9: #{tpu_custom_call.1} parent=1 // pred_fallthru
      _
    // Predicated region
    $region10: #{tpu_custom_call.1} parent=1 // pred_check
      _
    $region11: #{tpu_custom_call.1} parent=1 // pred_check_branch
      %39 = sbr.rel (0) target = $region13
    $region12: #{tpu_custom_call.1} parent=1 // pred_region
      %s41 = ssub.s32 16, 16
      %42 = vsyncadd [#allocation6], %s41
      %s44 = sshll.u32 [#allocation7], 4
      %s45 = int_to_ptr.vmem [resolvable:$true] %s44
      %47 = dma.hbm_to_vmem [thread:$0]  %s2, 16, %s45, [#allocation6]
    $region13: #{tpu_custom_call.1} parent=1 // pred_fallthru
      _
    // Predicated region
    $region14: #{tpu_custom_call.1} parent=1 // pred_check
      _
    $region15: #{tpu_custom_call.1} parent=1 // pred_check_branch
      %49 = sbr.rel (0) target = $region17
    $region16: #{tpu_custom_call.1} parent=1 // pred_region
      %s51 = ssub.s32 2048, 2048
      %52 = vsyncadd [#allocation9], %s51
      %s53 = sshll.u32 [#allocation8], 4
      %s54 = int_to_ptr.vmem [resolvable:$true] %s53
      %59 = dma.hbm_to_vmem [thread:$0]  %s3, 2048, %s54, [#allocation9], 128, 128, 8
    $region17: #{tpu_custom_call.1} parent=1 // pred_fallthru
      _
    // Predicated region
    $region18: #{tpu_custom_call.1} parent=1 // pred_check
      _
    $region19: #{tpu_custom_call.1} parent=1 // pred_check_branch
      %61 = sbr.rel (0) target = $region21
    $region20: #{tpu_custom_call.1} parent=1 // pred_region
      %s63 = ssub.s32 16, 16
      %64 = vsyncadd [#allocation9], %s63
      %s66 = sshll.u32 [#allocation10], 4
      %s67 = int_to_ptr.vmem [resolvable:$true] %s66
      %69 = dma.hbm_to_vmem [thread:$0]  %s4, 16, %s67, [#allocation9]
    $region21: #{tpu_custom_call.1} parent=1 // pred_fallthru
      _
    // Predicated region
    $region22: #{tpu_custom_call.1} parent=1 // pred_check
      _
    $region23: #{tpu_custom_call.1} parent=1 // pred_check_branch
      %71 = sbr.rel (0) target = $region25
    $region24: #{tpu_custom_call.1} parent=1 // pred_region
      %72 = dma.done [#allocation3], 256
    $region25: #{tpu_custom_call.1} parent=1 // pred_fallthru
      _
    // Predicated region
    $region26: #{tpu_custom_call.1} parent=1 // pred_check
      _
    $region27: #{tpu_custom_call.1} parent=1 // pred_check_branch
      %74 = sbr.rel (0) target = $region29
    $region28: #{tpu_custom_call.1} parent=1 // pred_region
      %75 = dma.done [#allocation6], 2048
    $region29: #{tpu_custom_call.1} parent=1 // pred_fallthru
      _
    // Predicated region
    $region30: #{tpu_custom_call.1} parent=1 // pred_check
      _
    $region31: #{tpu_custom_call.1} parent=1 // pred_check_branch
      %77 = sbr.rel (0) target = $region33
    $region32: #{tpu_custom_call.1} parent=1 // pred_region
      %78 = dma.done [#allocation6], 16
    $region33: #{tpu_custom_call.1} parent=1 // pred_fallthru
      _
    // Predicated region
    $region34: #{tpu_custom_call.1} parent=1 // pred_check
      _
    $region35: #{tpu_custom_call.1} parent=1 // pred_check_branch
      %80 = sbr.rel (0) target = $region37
    $region36: #{tpu_custom_call.1} parent=1 // pred_region
      %81 = dma.done [#allocation9], 2048
    $region37: #{tpu_custom_call.1} parent=1 // pred_fallthru
      _
    // Predicated region
    $region38: #{tpu_custom_call.1} parent=1 // pred_check
      _
    $region39: #{tpu_custom_call.1} parent=1 // pred_check_branch
      %83 = sbr.rel (0) target = $region41
    $region40: #{tpu_custom_call.1} parent=1 // pred_region
      %84 = dma.done [#allocation9], 16
    $region41: #{tpu_custom_call.1} parent=1 // pred_fallthru
      _
    %v85 = vld [vmem:[#allocation2] sm:$0xff]
    %v86 = vld [vmem:[#allocation2 + $0x8] sm:$0xff]
    %v87 = vld [vmem:[#allocation5] sm:$0xff]
    %v88 = vld [vmem:[#allocation5 + $0x8] sm:$0xff]
    %v89 = vld [vmem:[#allocation5 + $0x10] sm:$0xff]
    %v90 = vld [vmem:[#allocation5 + $0x18] sm:$0xff]
    %v91 = vld [vmem:[#allocation5 + $0x20] sm:$0xff]
    %v92 = vld [vmem:[#allocation5 + $0x28] sm:$0xff]
    %v93 = vld [vmem:[#allocation5 + $0x30] sm:$0xff]
    %v94 = vld [vmem:[#allocation5 + $0x38] sm:$0xff]
    %v95 = vld [vmem:[#allocation5 + $0x40] sm:$0xff]
    %v96 = vld [vmem:[#allocation5 + $0x48] sm:$0xff]
    %v97 = vld [vmem:[#allocation5 + $0x50] sm:$0xff]
    %v98 = vld [vmem:[#allocation5 + $0x58] sm:$0xff]
    %v99 = vld [vmem:[#allocation5 + $0x60] sm:$0xff]
    %v100 = vld [vmem:[#allocation5 + $0x68] sm:$0xff]
    %v101 = vld [vmem:[#allocation5 + $0x70] sm:$0xff]
    %v102 = vld [vmem:[#allocation5 + $0x78] sm:$0xff]
    %v103 = vld [vmem:[#allocation7] sm:$0x1]
    %v105 = vlaneseq
    %v106 = vshrl.u32 %v105, 7
    %v107 = vsub.s32 0, %v106
    %v108 = vrot.slane %v103, %v107
    %110 = vmatprep.subr.mxu0 0.0
    %111 = vmatpush1.msra.mxu0 %v87
    %112 = vmatprep.subr.mxu0 0.0
    %113 = vmatpush1.msra.mxu0 %v88
    %114 = vmatprep.subr.mxu0 0.0
    %115 = vmatpush1.msra.mxu0 %v89
    %116 = vmatprep.subr.mxu0 0.0
    %117 = vmatpush1.msra.mxu0 %v90
    %118 = vmatprep.subr.mxu0 0.0
    %119 = vmatpush1.msra.mxu0 %v91
    %120 = vmatprep.subr.mxu0 0.0
    %121 = vmatpush1.msra.mxu0 %v92
    %122 = vmatprep.subr.mxu0 0.0
    %123 = vmatpush1.msra.mxu0 %v93
    %124 = vmatprep.subr.mxu0 0.0
    %125 = vmatpush1.msra.mxu0 %v94
    %126 = vmatprep.subr.mxu0 0.0
    %127 = vmatpush1.msra.mxu0 %v95
    %128 = vmatprep.subr.mxu0 0.0
    %129 = vmatpush1.msra.mxu0 %v96
    %130 = vmatprep.subr.mxu0 0.0
    %131 = vmatpush1.msra.mxu0 %v97
    %132 = vmatprep.subr.mxu0 0.0
    %133 = vmatpush1.msra.mxu0 %v98
    %134 = vmatprep.subr.mxu0 0.0
    %135 = vmatpush1.msra.mxu0 %v99
    %136 = vmatprep.subr.mxu0 0.0
    %137 = vmatpush1.msra.mxu0 %v100
    %138 = vmatprep.subr.mxu0 0.0
    %139 = vmatpush1.msra.mxu0 %v101
    %140 = vmatprep.subr.mxu0 0.0
    %141 = vmatpush1.msra.mxu0 %v102
    %142 = vmatprep.subr.mxu0 0.0
    %143 = vmatpush1.msra.mxu0 0.0
    %144 = vmatprep.subr.mxu0 0.0
    %145 = vmatpush1.msra.mxu0 0.0
    %146 = vmatprep.subr.mxu0 0.0
    %147 = vmatpush1.msra.mxu0 0.0
    %148 = vmatprep.subr.mxu0 0.0
    %149 = vmatpush1.msra.mxu0 0.0
    %150 = vmatprep.subr.mxu0 0.0
    %151 = vmatpush1.msra.mxu0 0.0
    %152 = vmatprep.subr.mxu0 0.0
    %153 = vmatpush1.msra.mxu0 0.0
    %154 = vmatprep.subr.mxu0 0.0
    %155 = vmatpush1.msra.mxu0 0.0
    %156 = vmatprep.subr.mxu0 0.0
    %157 = vmatpush1.msra.mxu0 0.0
    %158 = vmatprep.subr.mxu0 0.0
    %159 = vmatpush1.msra.mxu0 0.0
    %160 = vmatprep.subr.mxu0 0.0
    %161 = vmatpush1.msra.mxu0 0.0
    %162 = vmatprep.subr.mxu0 0.0
    %163 = vmatpush1.msra.mxu0 0.0
    %164 = vmatprep.subr.mxu0 0.0
    %165 = vmatpush1.msra.mxu0 0.0
    %166 = vmatprep.subr.mxu0 0.0
    %167 = vmatpush1.msra.mxu0 0.0
    %168 = vmatprep.subr.mxu0 0.0
    %169 = vmatpush1.msra.mxu0 0.0
    %170 = vmatprep.subr.mxu0 0.0
    %171 = vmatpush1.msra.mxu0 0.0
    %172 = vmatprep.subr.mxu0 0.0
    %173 = vmatpush1.msra.mxu0 0.0
    %174 = vmatprep.mubr.f32.mxu0 0.0
    %175 = vmatmul.mubr.f32.gmra.mrb[0].mxu0 %v85
    %v176 = vpop.f32.mrb[0].mxu0
    %v177 = vadd.f32 %v108, %v176
    %v178 = vpop.f32.mrb[0].mxu0
    %179 = vmatprep.mubr.f32.mxu0 0.0
    %180 = vmatmul.mubr.f32.gmra.mrb[0].mxu0 %v86
    %v181 = vpop.f32.mrb[0].mxu0
    %v182 = vadd.f32 %v108, %v181
    %v183 = vpop.f32.mrb[0].mxu0
    %184 = vdwg.mxu0
    %v185 = vmax.f32 %v177, 0.0
    %v186 = vmax.f32 %v182, 0.0
    %v187 = vld [vmem:[#allocation8] sm:$0xff]
    %v188 = vld [vmem:[#allocation8 + $0x8] sm:$0xff]
    %v189 = vld [vmem:[#allocation8 + $0x10] sm:$0xff]
    %v190 = vld [vmem:[#allocation8 + $0x18] sm:$0xff]
    %v191 = vld [vmem:[#allocation8 + $0x20] sm:$0xff]
    %v192 = vld [vmem:[#allocation8 + $0x28] sm:$0xff]
    %v193 = vld [vmem:[#allocation8 + $0x30] sm:$0xff]
    %v194 = vld [vmem:[#allocation8 + $0x38] sm:$0xff]
    %v195 = vld [vmem:[#allocation8 + $0x40] sm:$0xff]
    %v196 = vld [vmem:[#allocation8 + $0x48] sm:$0xff]
    %v197 = vld [vmem:[#allocation8 + $0x50] sm:$0xff]
    %v198 = vld [vmem:[#allocation8 + $0x58] sm:$0xff]
    %v199 = vld [vmem:[#allocation8 + $0x60] sm:$0xff]
    %v200 = vld [vmem:[#allocation8 + $0x68] sm:$0xff]
    %v201 = vld [vmem:[#allocation8 + $0x70] sm:$0xff]
    %v202 = vld [vmem:[#allocation8 + $0x78] sm:$0xff]
    %v203 = vld [vmem:[#allocation10] sm:$0x1]
    %v205 = vlaneseq
    %v206 = vshrl.u32 %v205, 7
    %v207 = vsub.s32 0, %v206
    %v208 = vrot.slane %v203, %v207
    %210 = vmatprep.subr.mxu0 0.0
    %211 = vmatpush1.msra.mxu0 %v187
    %212 = vmatprep.subr.mxu0 0.0
    %213 = vmatpush1.msra.mxu0 %v188
    %214 = vmatprep.subr.mxu0 0.0
    %215 = vmatpush1.msra.mxu0 %v189
    %216 = vmatprep.subr.mxu0 0.0
    %217 = vmatpush1.msra.mxu0 %v190
    %218 = vmatprep.subr.mxu0 0.0
    %219 = vmatpush1.msra.mxu0 %v191
    %220 = vmatprep.subr.mxu0 0.0
    %221 = vmatpush1.msra.mxu0 %v192
    %222 = vmatprep.subr.mxu0 0.0
    %223 = vmatpush1.msra.mxu0 %v193
    %224 = vmatprep.subr.mxu0 0.0
    %225 = vmatpush1.msra.mxu0 %v194
    %226 = vmatprep.subr.mxu0 0.0
    %227 = vmatpush1.msra.mxu0 %v195
    %228 = vmatprep.subr.mxu0 0.0
    %229 = vmatpush1.msra.mxu0 %v196
    %230 = vmatprep.subr.mxu0 0.0
    %231 = vmatpush1.msra.mxu0 %v197
    %232 = vmatprep.subr.mxu0 0.0
    %233 = vmatpush1.msra.mxu0 %v198
    %234 = vmatprep.subr.mxu0 0.0
    %235 = vmatpush1.msra.mxu0 %v199
    %236 = vmatprep.subr.mxu0 0.0
    %237 = vmatpush1.msra.mxu0 %v200
    %238 = vmatprep.subr.mxu0 0.0
    %239 = vmatpush1.msra.mxu0 %v201
    %240 = vmatprep.subr.mxu0 0.0
    %241 = vmatpush1.msra.mxu0 %v202
    %242 = vmatprep.subr.mxu0 0.0
    %243 = vmatpush1.msra.mxu0 0.0
    %244 = vmatprep.subr.mxu0 0.0
    %245 = vmatpush1.msra.mxu0 0.0
    %246 = vmatprep.subr.mxu0 0.0
    %247 = vmatpush1.msra.mxu0 0.0
    %248 = vmatprep.subr.mxu0 0.0
    %249 = vmatpush1.msra.mxu0 0.0
    %250 = vmatprep.subr.mxu0 0.0
    %251 = vmatpush1.msra.mxu0 0.0
    %252 = vmatprep.subr.mxu0 0.0
    %253 = vmatpush1.msra.mxu0 0.0
    %254 = vmatprep.subr.mxu0 0.0
    %255 = vmatpush1.msra.mxu0 0.0
    %256 = vmatprep.subr.mxu0 0.0
    %257 = vmatpush1.msra.mxu0 0.0
    %258 = vmatprep.subr.mxu0 0.0
    %259 = vmatpush1.msra.mxu0 0.0
    %260 = vmatprep.subr.mxu0 0.0
    %261 = vmatpush1.msra.mxu0 0.0
    %262 = vmatprep.subr.mxu0 0.0
    %263 = vmatpush1.msra.mxu0 0.0
    %264 = vmatprep.subr.mxu0 0.0
    %265 = vmatpush1.msra.mxu0 0.0
    %266 = vmatprep.subr.mxu0 0.0
    %267 = vmatpush1.msra.mxu0 0.0
    %268 = vmatprep.subr.mxu0 0.0
    %269 = vmatpush1.msra.mxu0 0.0
    %270 = vmatprep.subr.mxu0 0.0
    %271 = vmatpush1.msra.mxu0 0.0
    %272 = vmatprep.subr.mxu0 0.0
    %273 = vmatpush1.msra.mxu0 0.0
    %274 = vmatprep.mubr.f32.mxu0 0.0
    %275 = vmatmul.mubr.f32.gmra.mrb[0].mxu0 %v185
    %v276 = vpop.f32.mrb[0].mxu0
    %v277 = vadd.f32 %v208, %v276
    %v278 = vpop.f32.mrb[0].mxu0
    %279 = vmatprep.mubr.f32.mxu0 0.0
    %280 = vmatmul.mubr.f32.gmra.mrb[0].mxu0 %v186
    %v281 = vpop.f32.mrb[0].mxu0
    %v282 = vadd.f32 %v208, %v281
    %v283 = vpop.f32.mrb[0].mxu0
    %284 = vdwg.mxu0
    %285 = vst [vmem:[#allocation11] sm:$0xff] %v277
    %286 = vst [vmem:[#allocation11 + $0x8] sm:$0xff] %v282
    // Predicated region
    $region42: #{tpu_custom_call.1} parent=1 // pred_check
      _
    $region43: #{tpu_custom_call.1} parent=1 // pred_check_branch
      %288 = sbr.rel (0) target = $region45
    $region44: #{tpu_custom_call.1} parent=1 // pred_region
      %s290 = ssub.s32 256, 256
      %291 = vsyncadd [#allocation4], %s290
      %s292 = sshll.u32 [#allocation11], 4
      %s293 = int_to_ptr.vmem [resolvable:$true] %s292
      %298 = dma.vmem_to_hbm [thread:$0]  %s293, 256, %s5, [#allocation4], 128, 128, 8
    $region45: #{tpu_custom_call.1} parent=1 // pred_fallthru
      _
    // Predicated region
    $region46: #{tpu_custom_call.1} parent=1 // pred_check
      _
    $region47: #{tpu_custom_call.1} parent=1 // pred_check_branch
      %300 = sbr.rel (0) target = $region49
    $region48: #{tpu_custom_call.1} parent=1 // pred_region
      %301 = dma.done [#allocation4], 256
    $region49: #{tpu_custom_call.1} parent=1 // pred_fallthru
      _
    %302 = vsyncpa [#allocation3], 1
    %303 = vsyncpa [#allocation6], 1
    %304 = vsyncpa [#allocation9], 1
    %305 = vsyncpa [#allocation4], 1

</llo_original>
